<compile_context>
chip_gen: v7x
topology: tpu7x:2x2x1
jax: 0.10.0
libtpu: 0.0.40
codegen_flags: <defaults>
</compile_context>

<pallas_src>
from typing import NamedTuple, Tuple

import jax
import jax.numpy as jnp
from jax.experimental import pallas as pl
from jax.experimental.pallas import tpu as pltpu


def _round_up(x, m):
    return (x + m - 1) // m * m


def _cdiv(a, b):
    return (a + b - 1) // b


class PreparedParams(NamedTuple):
    """Padded / pre-cast parameters (build once with prepare_params, reuse per step)."""
    weights: Tuple[jax.Array, ...]   # compute_dtype, shape [in(_pad), out(_pad)]
    biases: Tuple[jax.Array, ...]    # f32, shape [1, out(_pad)]
    state_size: int
    action_size: int
    k_pad: int
    out_pad: int
    compute_dtype: object


def prepare_params(params, *, compute_dtype=jnp.bfloat16):
    """One-time cast/pad of the [(W, b), ...] list (W: [in, out], b: [1, out]).

    Hoisted out of the forward path so an inference/training loop does not re-run
    convert+pad XLA ops (and the associated HBM rewrite) on every call.
    """
    num_layers = len(params)
    state_size = int(params[0][0].shape[0])
    action_size = int(params[-1][0].shape[1])
    k_pad = _round_up(state_size, 128)       # lane-dense input rows -> unmasked vld
    out_pad = _round_up(action_size, 128)    # lane-dense output -> unmasked vst

    weights, biases = [], []
    for i, (w, b) in enumerate(params):
        w = w.astype(compute_dtype)
        b = b.reshape(1, -1).astype(jnp.float32)
        if i == 0 and k_pad != state_size:
            w = jnp.pad(w, ((0, k_pad - state_size), (0, 0)))
        if i == num_layers - 1 and out_pad != action_size:
            w = jnp.pad(w, ((0, 0), (0, out_pad - action_size)))
            b = jnp.pad(b, ((0, 0), (0, out_pad - action_size)))
        weights.append(w)
        biases.append(b)
    return PreparedParams(tuple(weights), tuple(biases), state_size, action_size,
                          k_pad, out_pad, compute_dtype)


def _make_mlp_kernel(num_layers, compute_dtype):
    """out = (...relu(relu(x@W0+b0)@W1+b1)...)@W_last+b_last for one batch tile."""

    def kernel(*refs):
        # refs = (x_ref, W0_ref, b0_ref, W1_ref, b1_ref, ..., out_ref)
        x_ref = refs[0]
        out_ref = refs[-1]
        h = x_ref[...]
        for i in range(num_layers):
            w_ref = refs[1 + 2 * i]
            b_ref = refs[2 + 2 * i]
            # MXU matmul with f32 accumulation.
            acc = jnp.dot(h, w_ref[...], preferred_element_type=jnp.float32)
            # Bias add + ReLU stay on the f32 VPU path (v5e-safe).
            acc = acc + b_ref[...]
            if i < num_layers - 1:
                acc = jnp.maximum(acc, 0.0)
                h = acc.astype(compute_dtype)   # cast only right before the next dot
            else:
                h = acc
        out_ref[...] = h.astype(out_ref.dtype)

    return kernel


def _vmem_budget_bytes():
    """Generation-aware scoped-VMEM budget (v5e/v6e: 128 MiB, v7x: 64 MiB)."""
    try:
        cap = int(pltpu.get_tpu_info().vmem_capacity_bytes)
    except Exception:
        cap = 64 * 1024 * 1024   # conservative default (v7x per-core VMEM)
    return (cap * 3) // 4


def _estimate_vmem_bytes(tb, prepared, out_dtype, weight_buffers):
    """Rough resident-VMEM estimate: weights + double-buffered I/O tiles + activations."""
    c_item = jnp.dtype(prepared.compute_dtype).itemsize
    o_item = jnp.dtype(out_dtype).itemsize
    w_bytes = sum(int(w.size) * c_item for w in prepared.weights)
    b_bytes = sum(int(b.size) * b.dtype.itemsize for b in prepared.biases)
    resident = weight_buffers * (w_bytes + b_bytes)
    io = 2 * tb * prepared.k_pad * c_item + 2 * tb * prepared.out_pad * o_item
    widest = max([prepared.k_pad] + [int(w.shape[1]) for w in prepared.weights])
    act = 2 * tb * widest * (4 + c_item)   # f32 accumulator + compute-dtype copy, 2x slack
    return resident + io + act


def qnetwork_forward(state, params, *, block_batch=1024, compute_dtype=jnp.bfloat16):
    """Pallas forward pass of the QNetwork MLP.

    Args:
      state: f32[batch, state_size]
      params: PreparedParams (preferred; build once via prepare_params) or a raw
              list of (W, b) with W: f32[in, out] (pre-transposed vs torch), b: [1, out].
      block_batch: requested batch tile; tiles are balanced across grid steps.
      compute_dtype: MXU input / storage dtype (accumulation is always f32).
                     Use jnp.float32 for near-bit-faithful parity with PyTorch.
    Returns:
      f32[batch, action_size]
    """
    prepared = params if isinstance(params, PreparedParams) else prepare_params(
        params, compute_dtype=compute_dtype)
    compute_dtype = prepared.compute_dtype
    num_layers = len(prepared.weights)
    batch, state_size = state.shape
    assert state_size == prepared.state_size, (state_size, prepared.state_size)

    # bf16 output writeback halves the dominant per-step HBM write; wrapper upcasts.
    out_dtype = compute_dtype if jnp.dtype(compute_dtype).itemsize < 4 else jnp.float32
    sublane = 16 if jnp.dtype(compute_dtype).itemsize < 4 else 8

    # ---- balanced batch tiling -------------------------------------------------
    block_batch = max(sublane, int(block_batch))
    n_steps = _cdiv(batch, block_batch)
    if n_steps > 1 and n_steps % 2 == 1:
        n_steps += 1                      # even step count -> both v7x TCs stay busy
    tb = _round_up(_cdiv(batch, n_steps), sublane)

    # Shrink the tile if it would overflow this generation's VMEM budget.
    budget = _vmem_budget_bytes()
    while tb > sublane and _estimate_vmem_bytes(tb, prepared, out_dtype, 1) > budget:
        tb = max(sublane, _round_up(tb // 2, sublane))
    # TODO(synk): add a K/N weight-tiling grid axis (pl.when-guarded accumulator) for
    # configs whose weights alone exceed the VMEM budget (e.g. hidden >= 4096 bf16 on v7x).

    batch_pad = _round_up(batch, tb)
    grid = (batch_pad // tb,)

    # ---- inputs ------------------------------------------------------------------
    x = state.astype(compute_dtype)
    if (batch_pad, prepared.k_pad) != (batch, state_size):
        x = jnp.pad(x, ((0, batch_pad - batch), (0, prepared.k_pad - state_size)))

    flat_args = [x]
    for w, b in zip(prepared.weights, prepared.biases):
        flat_args.extend([w, b])

    def build_in_specs(single_buffer_weights):
        specs = [pl.BlockSpec((tb, prepared.k_pad), lambda i: (i, 0))]  # batch-tiled input
        for w, b in zip(prepared.weights, prepared.biases):
            # Constant index_map -> weights/biases stay VMEM-resident across grid steps;
            # single-buffer them since they are never re-fetched.
            if single_buffer_weights:
                specs.append(pl.BlockSpec(w.shape, lambda i: (0, 0),
                                          pipeline_mode=pl.Buffered(buffer_count=1)))
                specs.append(pl.BlockSpec(b.shape, lambda i: (0, 0),
                                          pipeline_mode=pl.Buffered(buffer_count=1)))
            else:
                specs.append(pl.BlockSpec(w.shape, lambda i: (0, 0)))
                specs.append(pl.BlockSpec(b.shape, lambda i: (0, 0)))
        return specs

    kernel = _make_mlp_kernel(num_layers, compute_dtype)
    out_shape = jax.ShapeDtypeStruct((batch_pad, prepared.out_pad), out_dtype)
    out_spec = pl.BlockSpec((tb, prepared.out_pad), lambda i: (i, 0))
    compiler_params = pltpu.CompilerParams(
        dimension_semantics=("parallel",),   # shard batch tiles across TCs (v7x megacore)
        vmem_limit_bytes=int(budget),
    )

    out_padded = None
    for single_buf in (True, False):
        try:
            out_padded = pl.pallas_call(
                kernel,
                out_shape=out_shape,
                grid=grid,
                in_specs=build_in_specs(single_buf),
                out_specs=out_spec,
                compiler_params=compiler_params,
            )(*flat_args)
            break
        except Exception:
            # Fall back to default double-buffered weights if Buffered(1) is rejected.
            if not single_buf:
                raise

    # Padded rows/columns carry relu(bias)-propagated junk; slice them off here.
    return out_padded[:batch, :prepared.action_size].astype(jnp.float32)


def init_qnetwork_params(key, state_size, action_size, hidden_layer):
    """Deterministic init mimicking torch.nn.Linear default (U[-1/sqrt(fan_in), ...]).

    Weights stored transposed vs PyTorch: [in_features, out_features]; biases [1, out].
    """
    sizes = [state_size] + list(hidden_layer) + [action_size]
    params = []
    for i in range(len(sizes) - 1):
        fan_in, fan_out = sizes[i], sizes[i + 1]
        key, wk, bk = jax.random.split(key, 3)
        bound = 1.0 / jnp.sqrt(jnp.float32(fan_in))
        w = jax.random.uniform(wk, (fan_in, fan_out), jnp.float32, -bound, bound)
        b = jax.random.uniform(bk, (1, fan_out), jnp.float32, -bound, bound)
        params.append((w, b))
    return params


def qnetwork_reference(state, params, compute_dtype=jnp.float32):
    """Pure-JAX reference. With compute_dtype=bf16 it mirrors the kernel's cast points."""
    h = state.astype(compute_dtype)
    for i, (w, b) in enumerate(params):
        h = jnp.dot(h, w.astype(compute_dtype), preferred_element_type=jnp.float32)
        h = h + b.astype(jnp.float32)
        if i < len(params) - 1:
            h = jnp.maximum(h, 0.0).astype(compute_dtype)
    return h


if __name__ == "__main__":
    # Small shapes consistent with the module: state -> hidden -> action values.
    batch = 64
    state_size = 8
    hidden_layer = [32]      # module default is [512]; scaled down for the example
    action_size = 4

    key = jax.random.PRNGKey(0)
    key, pkey, xkey = jax.random.split(key, 3)

    params = init_qnetwork_params(pkey, state_size, action_size, hidden_layer)
    state = jax.random.normal(xkey, (batch, state_size), jnp.float32)

    # One-time cast/pad (hoisted out of the forward path); reuse across calls.
    prepared_bf16 = prepare_params(params, compute_dtype=jnp.bfloat16)

    # block_batch=32 -> balanced 2-step grid at this toy batch (exercises the
    # software pipeline and the v7x "parallel" batch axis).
    out = qnetwork_forward(state, prepared_bf16, block_batch=32)
    out = jax.block_until_ready(out)
    assert out.shape == (batch, action_size), out.shape

    # Tight check vs. a reference that mirrors the kernel's bf16 cast points.
    ref_bf16 = qnetwork_reference(state, params, compute_dtype=jnp.bfloat16)
    assert jnp.allclose(out, ref_bf16, atol=1e-2, rtol=1e-2), "mismatch vs bf16-path reference"

    # Looser check vs. the pure-f32 PyTorch-equivalent math.
    ref_f32 = qnetwork_reference(state, params, compute_dtype=jnp.float32)
    assert jnp.allclose(out, ref_f32, atol=5e-2, rtol=5e-2), "mismatch vs f32 reference"

    # Full-precision compute path (single grid step at default block_batch).
    prepared_f32 = prepare_params(params, compute_dtype=jnp.float32)
    out_f32 = jax.block_until_ready(qnetwork_forward(state, prepared_f32))
    assert out_f32.shape == (batch, action_size), out_f32.shape
    assert jnp.allclose(out_f32, ref_f32, atol=1e-5, rtol=1e-5), "mismatch on f32 compute path"

    print("KERNEL_OK")
</pallas_src>

<mosaic_0001>
module attributes {stable_mosaic.version = 11 : i64} {
  func.func @kernel(%arg0: i32, %arg1: memref<32x128xbf16, #tpu.memory_space<vmem>>, %arg2: memref<128x32xbf16, #tpu.memory_space<vmem>>, %arg3: memref<1x32xf32, #tpu.memory_space<vmem>>, %arg4: memref<32x128xbf16, #tpu.memory_space<vmem>>, %arg5: memref<1x128xf32, #tpu.memory_space<vmem>>, %arg6: memref<32x128xbf16, #tpu.memory_space<vmem>>) attributes {dimension_semantics = [#tpu.dimension_semantics<parallel>], iteration_bounds = array<i64: 2>, scalar_prefetch = 0 : i64, scratch_operands = 0 : i64, tpu.core_type = #tpu.core_type<tc>, window_params = [{transform_indices = @transform_0, window_bounds = array<i64: 32, 128>}, {pipeline_mode = #tpu.pipeline_mode<synchronous>, transform_indices = @transform_1, window_bounds = array<i64: 128, 32>}, {pipeline_mode = #tpu.pipeline_mode<synchronous>, transform_indices = @transform_2, window_bounds = array<i64: 1, 32>}, {pipeline_mode = #tpu.pipeline_mode<synchronous>, transform_indices = @transform_3, window_bounds = array<i64: 32, 128>}, {pipeline_mode = #tpu.pipeline_mode<synchronous>, transform_indices = @transform_4, window_bounds = array<i64: 1, 128>}, {transform_indices = @transform_5, window_bounds = array<i64: 32, 128>}]} {
    %c0 = arith.constant 0 : index
    %c0_0 = arith.constant 0 : index
    %0 = vector.load %arg1[%c0, %c0_0] : memref<32x128xbf16, #tpu.memory_space<vmem>>, vector<32x128xbf16>
    %c0_1 = arith.constant 0 : index
    %c0_2 = arith.constant 0 : index
    %1 = vector.load %arg2[%c0_1, %c0_2] : memref<128x32xbf16, #tpu.memory_space<vmem>>, vector<128x32xbf16>
    %cst = arith.constant dense<0.000000e+00> : vector<32x32xf32>
    %2 = tpu.matmul %0, %1, %cst {dimension_numbers = #tpu.dot_dimension_numbers<[1], [0], [0], [1], [0, 0, 1, 1], [], []>} : vector<32x128xbf16>, vector<128x32xbf16>, vector<32x32xf32> -> vector<32x32xf32>
    %c0_3 = arith.constant 0 : index
    %c0_4 = arith.constant 0 : index
    %3 = vector.load %arg3[%c0_3, %c0_4] : memref<1x32xf32, #tpu.memory_space<vmem>>, vector<1x32xf32>
    %4 = vector.broadcast %3 : vector<1x32xf32> to vector<32x32xf32>
    %5 = arith.addf %2, %4 : vector<32x32xf32>
    %cst_5 = arith.constant 0.000000e+00 : f32
    %6 = vector.broadcast %cst_5 : f32 to vector<32x32xf32>
    %7 = arith.maximumf %5, %6 : vector<32x32xf32>
    %8 = arith.truncf %7 : vector<32x32xf32> to vector<32x32xbf16>
    %c0_6 = arith.constant 0 : index
    %c0_7 = arith.constant 0 : index
    %9 = vector.load %arg4[%c0_6, %c0_7] : memref<32x128xbf16, #tpu.memory_space<vmem>>, vector<32x128xbf16>
    %cst_8 = arith.constant dense<0.000000e+00> : vector<32x128xf32>
    %10 = tpu.matmul %8, %9, %cst_8 {dimension_numbers = #tpu.dot_dimension_numbers<[1], [0], [0], [1], [0, 0, 1, 1], [], []>} : vector<32x32xbf16>, vector<32x128xbf16>, vector<32x128xf32> -> vector<32x128xf32>
    %c0_9 = arith.constant 0 : index
    %c0_10 = arith.constant 0 : index
    %11 = vector.load %arg5[%c0_9, %c0_10] : memref<1x128xf32, #tpu.memory_space<vmem>>, vector<1x128xf32>
    %12 = vector.broadcast %11 : vector<1x128xf32> to vector<32x128xf32>
    %13 = arith.addf %10, %12 : vector<32x128xf32>
    %14 = arith.truncf %13 : vector<32x128xf32> to vector<32x128xbf16>
    %c0_11 = arith.constant 0 : index
    %c0_12 = arith.constant 0 : index
    %15 = vector.load %arg6[%c0_11, %c0_12] : memref<32x128xbf16, #tpu.memory_space<vmem>>, vector<32x128xbf16>
    tpu.vector_store %arg6[%c0_11, %c0_12], %14 {strides = array<i32>} : memref<32x128xbf16, #tpu.memory_space<vmem>>, vector<32x128xbf16>,
    return
  }
  func.func @transform_0(%arg0: i32) -> (i32, i32) {
    %c0_i32 = arith.constant 0 : i32
    %c0_i32_0 = arith.constant 0 : i32
    return %arg0, %c0_i32 : i32, i32
  }
  func.func @transform_1(%arg0: i32) -> (i32, i32) {
    %c0_i32 = arith.constant 0 : i32
    %c0_i32_0 = arith.constant 0 : i32
    %c0_i32_1 = arith.constant 0 : i32
    return %c0_i32, %c0_i32_0 : i32, i32
  }
  func.func @transform_2(%arg0: i32) -> (i32, i32) {
    %c0_i32 = arith.constant 0 : i32
    %c0_i32_0 = arith.constant 0 : i32
    %c0_i32_1 = arith.constant 0 : i32
    return %c0_i32, %c0_i32_0 : i32, i32
  }
  func.func @transform_3(%arg0: i32) -> (i32, i32) {
    %c0_i32 = arith.constant 0 : i32
    %c0_i32_0 = arith.constant 0 : i32
    %c0_i32_1 = arith.constant 0 : i32
    return %c0_i32, %c0_i32_0 : i32, i32
  }
  func.func @transform_4(%arg0: i32) -> (i32, i32) {
    %c0_i32 = arith.constant 0 : i32
    %c0_i32_0 = arith.constant 0 : i32
    %c0_i32_1 = arith.constant 0 : i32
    return %c0_i32, %c0_i32_0 : i32, i32
  }
  func.func @transform_5(%arg0: i32) -> (i32, i32) {
    %c0_i32 = arith.constant 0 : i32
    %c0_i32_0 = arith.constant 0 : i32
    return %arg0, %c0_i32 : i32, i32
  }
}

module attributes {stable_mosaic.version = 11 : i64} {
  func.func @kernel(%arg0: i32, %arg1: memref<32x128xbf16, #tpu.memory_space<vmem>>, %arg2: memref<128x32xbf16, #tpu.memory_space<vmem>>, %arg3: memref<1x32xf32, #tpu.memory_space<vmem>>, %arg4: memref<32x128xbf16, #tpu.memory_space<vmem>>, %arg5: memref<1x128xf32, #tpu.memory_space<vmem>>, %arg6: memref<32x128xbf16, #tpu.memory_space<vmem>>) attributes {dimension_semantics = [#tpu.dimension_semantics<parallel>], iteration_bounds = array<i64: 2>, scalar_prefetch = 0 : i64, scratch_operands = 0 : i64, tpu.core_type = #tpu.core_type<tc>, window_params = [{transform_indices = @transform_0, window_bounds = array<i64: 32, 128>}, {pipeline_mode = #tpu.pipeline_mode<synchronous>, transform_indices = @transform_1, window_bounds = array<i64: 128, 32>}, {pipeline_mode = #tpu.pipeline_mode<synchronous>, transform_indices = @transform_2, window_bounds = array<i64: 1, 32>}, {pipeline_mode = #tpu.pipeline_mode<synchronous>, transform_indices = @transform_3, window_bounds = array<i64: 32, 128>}, {pipeline_mode = #tpu.pipeline_mode<synchronous>, transform_indices = @transform_4, window_bounds = array<i64: 1, 128>}, {transform_indices = @transform_5, window_bounds = array<i64: 32, 128>}]} {
    %c0 = arith.constant 0 : index
    %c0_0 = arith.constant 0 : index
    %0 = vector.load %arg1[%c0, %c0_0] : memref<32x128xbf16, #tpu.memory_space<vmem>>, vector<32x128xbf16>
    %c0_1 = arith.constant 0 : index
    %c0_2 = arith.constant 0 : index
    %1 = vector.load %arg2[%c0_1, %c0_2] : memref<128x32xbf16, #tpu.memory_space<vmem>>, vector<128x32xbf16>
    %cst = arith.constant dense<0.000000e+00> : vector<32x32xf32>
    %2 = tpu.matmul %0, %1, %cst {dimension_numbers = #tpu.dot_dimension_numbers<[1], [0], [0], [1], [0, 0, 1, 1], [], []>} : vector<32x128xbf16>, vector<128x32xbf16>, vector<32x32xf32> -> vector<32x32xf32>
    %c0_3 = arith.constant 0 : index
    %c0_4 = arith.constant 0 : index
    %3 = vector.load %arg3[%c0_3, %c0_4] : memref<1x32xf32, #tpu.memory_space<vmem>>, vector<1x32xf32>
    %4 = vector.broadcast %3 : vector<1x32xf32> to vector<32x32xf32>
    %5 = arith.addf %2, %4 : vector<32x32xf32>
    %cst_5 = arith.constant 0.000000e+00 : f32
    %6 = vector.broadcast %cst_5 : f32 to vector<32x32xf32>
    %7 = arith.maximumf %5, %6 : vector<32x32xf32>
    %8 = arith.truncf %7 : vector<32x32xf32> to vector<32x32xbf16>
    %c0_6 = arith.constant 0 : index
    %c0_7 = arith.constant 0 : index
    %9 = vector.load %arg4[%c0_6, %c0_7] : memref<32x128xbf16, #tpu.memory_space<vmem>>, vector<32x128xbf16>
    %cst_8 = arith.constant dense<0.000000e+00> : vector<32x128xf32>
    %10 = tpu.matmul %8, %9, %cst_8 {dimension_numbers = #tpu.dot_dimension_numbers<[1], [0], [0], [1], [0, 0, 1, 1], [], []>} : vector<32x32xbf16>, vector<32x128xbf16>, vector<32x128xf32> -> vector<32x128xf32>
    %c0_9 = arith.constant 0 : index
    %c0_10 = arith.constant 0 : index
    %11 = vector.load %arg5[%c0_9, %c0_10] : memref<1x128xf32, #tpu.memory_space<vmem>>, vector<1x128xf32>
    %12 = vector.broadcast %11 : vector<1x128xf32> to vector<32x128xf32>
    %13 = arith.addf %10, %12 : vector<32x128xf32>
    %14 = arith.truncf %13 : vector<32x128xf32> to vector<32x128xbf16>
    %c0_11 = arith.constant 0 : index
    %c0_12 = arith.constant 0 : index
    %15 = vector.load %arg6[%c0_11, %c0_12] : memref<32x128xbf16, #tpu.memory_space<vmem>>, vector<32x128xbf16>
    tpu.vector_store %arg6[%c0_11, %c0_12], %14 {strides = array<i32>} : memref<32x128xbf16, #tpu.memory_space<vmem>>, vector<32x128xbf16>,
    return
  }
  func.func @transform_0(%arg0: i32) -> (i32, i32) {
    %c0_i32 = arith.constant 0 : i32
    %c0_i32_0 = arith.constant 0 : i32
    return %arg0, %c0_i32 : i32, i32
  }
  func.func @transform_1(%arg0: i32) -> (i32, i32) {
    %c0_i32 = arith.constant 0 : i32
    %c0_i32_0 = arith.constant 0 : i32
    %c0_i32_1 = arith.constant 0 : i32
    return %c0_i32, %c0_i32_0 : i32, i32
  }
  func.func @transform_2(%arg0: i32) -> (i32, i32) {
    %c0_i32 = arith.constant 0 : i32
    %c0_i32_0 = arith.constant 0 : i32
    %c0_i32_1 = arith.constant 0 : i32
    return %c0_i32, %c0_i32_0 : i32, i32
  }
  func.func @transform_3(%arg0: i32) -> (i32, i32) {
    %c0_i32 = arith.constant 0 : i32
    %c0_i32_0 = arith.constant 0 : i32
    %c0_i32_1 = arith.constant 0 : i32
    return %c0_i32, %c0_i32_0 : i32, i32
  }
  func.func @transform_4(%arg0: i32) -> (i32, i32) {
    %c0_i32 = arith.constant 0 : i32
    %c0_i32_0 = arith.constant 0 : i32
    %c0_i32_1 = arith.constant 0 : i32
    return %c0_i32, %c0_i32_0 : i32, i32
  }
  func.func @transform_5(%arg0: i32) -> (i32, i32) {
    %c0_i32 = arith.constant 0 : i32
    %c0_i32_0 = arith.constant 0 : i32
    return %arg0, %c0_i32 : i32, i32
  }
}

</mosaic_0001>

<llo_original>
// kernel: tpu_custom_call.1
$region0: #{tpu_custom_call.1}
  #allocation0 [shape = 'u32[]', space=smem, size = 0x4, offset = 0x4, fixed_abs, tag = 'smem constant byte address 0x4 - core index']
  #allocation1 [shape = 'u32[144,128]{1,0:T(1,128)}', space=vmem, size = 0x12000, scoped, tag = 'internal scratch']
  %s0 = inlined_call_operand.vmem [shape: bf16[64,128], index: 0, kind: input, shape index: {}]
  %s1 = inlined_call_operand.vmem [shape: bf16[128,32], index: 1, kind: input, shape index: {}]
  %s2 = inlined_call_operand.vmem [shape: f32[1,32], index: 2, kind: input, shape index: {}]
  %s3 = inlined_call_operand.vmem [shape: bf16[32,128], index: 3, kind: input, shape index: {}]
  %s4 = inlined_call_operand.vmem [shape: f32[1,128], index: 4, kind: input, shape index: {}]
  %s5 = inlined_call_operand.hbm [shape: bf16[64,128], index: 5, kind: output, shape index: {}]
  %s6 = sld [smem:[#allocation0]]
  $region53: #{tpu_custom_call.1} parent=0
    _
  %s8 = ssub.s32 1, %s6
  %s9 = scalar_select 0, %s8, %s6
  $region1: #{tpu_custom_call.1} parent=0
    #allocation2 [shape = 'u8[16384]{0}', space=vmem, size = 0x4000, scoped, tag = 'output window, operand 0']
    #allocation3 [shape = 's32[2]{0}', space=sflag, size = 0x8, scoped, tag = 'scoped memory for tpu_custom_call.1']
    %10 = vsyncpa [#allocation3], 0
    %s11 = scalar_lea.sflag [#allocation3], 1
    %12 = vsyncpa %s11, 0
    loop: start=0, step=1, limit=4
    $region2: #{tpu_custom_call.1} parent=1 // loop_pre_header
      _
    $region3: #{tpu_custom_call.1} parent=1 // loop_header
      %s14 = sphi 0, %s18
      %p15 = scmp.ge.s32.totalorder %s14, 4
      %s24 = sphi 0, %s26
      %s27 = sphi 0, %s24
      %s28 = sphi 0, %s27
      %s44 = sphi 0, %s28
      %s48 = sphi 0, %s48
      %s50 = sphi 0, %s48
      %s51 = sphi 0, %s50
      %s65 = sphi 0, %s51
      %s69 = sphi 0, %s69
      %s71 = sphi 0, %s69
      %s72 = sphi 0, %s71
      %s86 = sphi 0, %s72
      %s90 = sphi 0, %s90
      %s92 = sphi 0, %s90
      %s93 = sphi 0, %s92
      %s107 = sphi 0, %s93
      %s111 = sphi 0, %s111
      %s113 = sphi 0, %s111
      %s114 = sphi 0, %s113
      %s128 = sphi 0, %s114
      %s134 = sphi 0, %s136
      %s137 = sphi 0, %s134
      %s138 = sphi 0, %s137
      %s154 = sphi 0, %s138
    $region4: #{tpu_custom_call.1} parent=1 // loop_header_branch
      %17 = sbr.rel (%p15) target = $region8
    $region5: #{tpu_custom_call.1} parent=1 // loop_body
      %s19 = ssub.s32 %s14, 1
      %s20 = ssub.s32 %s14, 2
      %s21 = sadd.s32 %s14, 1
      %s22 = ssub.s32 %s14, %s21
      %p23 = scmp.eq.s32.totalorder %s22, 0
      %s25 = sadd.s32 %s24, 1
      %s26 = scalar_select %p23, %s24, %s25
      %p29 = pneg %p23
      %p30 = scmp.eq.s32.totalorder %s14, 1
      %p31 = por %p29, %p30
      %p32 = scmp.ne.s32.totalorder %s24, %s27
      %p33 = scmp.eq.s32.totalorder %s14, 0
      %p34 = por %p32, %p33
      %p35 = scmp.ne.s32.totalorder %s24, %s27
      %p36 = scmp.eq.s32.totalorder %s19, 1
      %p37 = por %p35, %p36
      %p38 = scmp.ne.s32.totalorder %s27, %s28
      %p39 = scmp.eq.s32.totalorder %s19, 0
      %p40 = por %p38, %p39
      %p41 = scmp.ne.s32.totalorder %s27, %s28
      %p42 = scmp.eq.s32.totalorder %s20, 1
      %p43 = por %p41, %p42
      %p45 = scmp.ne.s32.totalorder %s28, %s44
      %p46 = scmp.eq.s32.totalorder %s20, 0
      %p47 = por %p45, %p46
      %s49 = sadd.s32 %s48, 1
      %p52 = scmp.eq.s32.totalorder %s14, 1
      %p53 = scmp.ne.s32.totalorder %s48, %s50
      %p54 = scmp.eq.s32.totalorder %s14, 0
      %p55 = por %p53, %p54
      %p56 = scmp.ne.s32.totalorder %s48, %s50
      %p57 = scmp.eq.s32.totalorder %s19, 1
      %p58 = por %p56, %p57
      %p59 = scmp.ne.s32.totalorder %s50, %s51
      %p60 = scmp.eq.s32.totalorder %s19, 0
      %p61 = por %p59, %p60
      %p62 = scmp.ne.s32.totalorder %s50, %s51
      %p63 = scmp.eq.s32.totalorder %s20, 1
      %p64 = por %p62, %p63
      %p66 = scmp.ne.s32.totalorder %s51, %s65
      %p67 = scmp.eq.s32.totalorder %s20, 0
      %p68 = por %p66, %p67
      %s70 = sadd.s32 %s69, 1
      %p73 = scmp.eq.s32.totalorder %s14, 1
      %p74 = scmp.ne.s32.totalorder %s69, %s71
      %p75 = scmp.eq.s32.totalorder %s14, 0
      %p76 = por %p74, %p75
      %p77 = scmp.ne.s32.totalorder %s69, %s71
      %p78 = scmp.eq.s32.totalorder %s19, 1
      %p79 = por %p77, %p78
      %p80 = scmp.ne.s32.totalorder %s71, %s72
      %p81 = scmp.eq.s32.totalorder %s19, 0
      %p82 = por %p80, %p81
      %p83 = scmp.ne.s32.totalorder %s71, %s72
      %p84 = scmp.eq.s32.totalorder %s20, 1
      %p85 = por %p83, %p84
      %p87 = scmp.ne.s32.totalorder %s72, %s86
      %p88 = scmp.eq.s32.totalorder %s20, 0
      %p89 = por %p87, %p88
      %s91 = sadd.s32 %s90, 1
      %p94 = scmp.eq.s32.totalorder %s14, 1
      %p95 = scmp.ne.s32.totalorder %s90, %s92
      %p96 = scmp.eq.s32.totalorder %s14, 0
      %p97 = por %p95, %p96
      %p98 = scmp.ne.s32.totalorder %s90, %s92
      %p99 = scmp.eq.s32.totalorder %s19, 1
      %p100 = por %p98, %p99
      %p101 = scmp.ne.s32.totalorder %s92, %s93
      %p102 = scmp.eq.s32.totalorder %s19, 0
      %p103 = por %p101, %p102
      %p104 = scmp.ne.s32.totalorder %s92, %s93
      %p105 = scmp.eq.s32.totalorder %s20, 1
      %p106 = por %p104, %p105
      %p108 = scmp.ne.s32.totalorder %s93, %s107
      %p109 = scmp.eq.s32.totalorder %s20, 0
      %p110 = por %p108, %p109
      %s112 = sadd.s32 %s111, 1
      %p115 = scmp.eq.s32.totalorder %s14, 1
      %p116 = scmp.ne.s32.totalorder %s111, %s113
      %p117 = scmp.eq.s32.totalorder %s14, 0
      %p118 = por %p116, %p117
      %p119 = scmp.ne.s32.totalorder %s111, %s113
      %p120 = scmp.eq.s32.totalorder %s19, 1
      %p121 = por %p119, %p120
      %p122 = scmp.ne.s32.totalorder %s113, %s114
      %p123 = scmp.eq.s32.totalorder %s19, 0
      %p124 = por %p122, %p123
      %p125 = scmp.ne.s32.totalorder %s113, %s114
      %p126 = scmp.eq.s32.totalorder %s20, 1
      %p127 = por %p125, %p126
      %p129 = scmp.ne.s32.totalorder %s114, %s128
      %p130 = scmp.eq.s32.totalorder %s20, 0
      %p131 = por %p129, %p130
      %s132 = ssub.s32 %s14, %s21
      %p133 = scmp.eq.s32.totalorder %s132, 0
      %s135 = sadd.s32 %s134, 1
      %s136 = scalar_select %p133, %s134, %s135
      %p139 = pneg %p133
      %p140 = scmp.eq.s32.totalorder %s14, 1
      %p141 = por %p139, %p140
      %p142 = scmp.ne.s32.totalorder %s134, %s137
      %p143 = scmp.eq.s32.totalorder %s14, 0
      %p144 = por %p142, %p143
      %p145 = scmp.ne.s32.totalorder %s134, %s137
      %p146 = scmp.eq.s32.totalorder %s19, 1
      %p147 = por %p145, %p146
      %p148 = scmp.ne.s32.totalorder %s137, %s138
      %p149 = scmp.eq.s32.totalorder %s19, 0
      %p150 = por %p148, %p149
      %p151 = scmp.ne.s32.totalorder %s137, %s138
      %p152 = scmp.eq.s32.totalorder %s20, 1
      %p153 = por %p151, %p152
      %p155 = scmp.ne.s32.totalorder %s138, %s154
      %p156 = scmp.eq.s32.totalorder %s20, 0
      %p157 = por %p155, %p156
      %p158 = scmp.le.s32.totalorder 1, %s14
      %p159 = scmp.lt.s32.totalorder %s14, 3
      %p160 = pnand %p158, %p159
      %p161 = pneg %p160
      // Predicated region
      $region9: #{tpu_custom_call.1} parent=5 // pred_check
        _
      $region10: #{tpu_custom_call.1} parent=5 // pred_check_branch
        %163 = sbr.rel (%p160) target = $region12
      $region11: #{tpu_custom_call.1} parent=5 // pred_region
        %s164 = ssub.s32 %s14, 1
        // Predicated region
        $region13: #{tpu_custom_call.1} parent=11 // pred_check
          %p165 = pneg %p61
        $region14: #{tpu_custom_call.1} parent=11 // pred_check_branch
          %167 = sbr.rel (%p165) target = $region16
        $region15: #{tpu_custom_call.1} parent=11 // pred_region
          _
        $region16: #{tpu_custom_call.1} parent=11 // pred_fallthru
          _
        // Predicated region
        $region17: #{tpu_custom_call.1} parent=11 // pred_check
          %p168 = pneg %p82
        $region18: #{tpu_custom_call.1} parent=11 // pred_check_branch
          %170 = sbr.rel (%p168) target = $region20
        $region19: #{tpu_custom_call.1} parent=11 // pred_region
          _
        $region20: #{tpu_custom_call.1} parent=11 // pred_fallthru
          _
        // Predicated region
        $region21: #{tpu_custom_call.1} parent=11 // pred_check
          %p171 = pneg %p103
        $region22: #{tpu_custom_call.1} parent=11 // pred_check_branch
          %173 = sbr.rel (%p171) target = $region24
        $region23: #{tpu_custom_call.1} parent=11 // pred_region
          _
        $region24: #{tpu_custom_call.1} parent=11 // pred_fallthru
          _
        // Predicated region
        $region25: #{tpu_custom_call.1} parent=11 // pred_check
          %p174 = pneg %p124
        $region26: #{tpu_custom_call.1} parent=11 // pred_check_branch
          %176 = sbr.rel (%p174) target = $region28
        $region27: #{tpu_custom_call.1} parent=11 // pred_region
          _
        $region28: #{tpu_custom_call.1} parent=11 // pred_fallthru
          _
      $region12: #{tpu_custom_call.1} parent=5 // pred_fallthru
        _
      %p177 = scmp.lt.s32.totalorder %s14, 2
      // Predicated region
      $region29: #{tpu_custom_call.1} parent=5 // pred_check
        %p178 = pneg %p177
      $region30: #{tpu_custom_call.1} parent=5 // pred_check_branch
        %180 = sbr.rel (%p178) target = $region32
      $region31: #{tpu_custom_call.1} parent=5 // pred_region
        // Predicated region
        $region33: #{tpu_custom_call.1} parent=31 // pred_check
          %p181 = pneg %p34
        $region34: #{tpu_custom_call.1} parent=31 // pred_check_branch
          %183 = sbr.rel (%p181) target = $region36
        $region35: #{tpu_custom_call.1} parent=31 // pred_region
          %s184 = smul.u32 4, %s14
          %p185 = scmp.lt.s32.totalorder %s184, 7
          %s186 = scalar_select %p185, %s184, 7
          %s187 = smul.addr %s186, 4
          %s188 = scalar_lea.vmem %s0, %s187
          %s189 = smul.u32 4, %s14
        $region36: #{tpu_custom_call.1} parent=31 // pred_fallthru
          _
      $region32: #{tpu_custom_call.1} parent=5 // pred_fallthru
        _
      %p190 = scmp.le.s32.totalorder 1, %s14
      %p191 = scmp.lt.s32.totalorder %s14, 3
      %p192 = pnand %p190, %p191
      %p193 = pneg %p192
      // Predicated region
      $region37: #{tpu_custom_call.1} parent=5 // pred_check
        _
      $region38: #{tpu_custom_call.1} parent=5 // pred_check_branch
        %195 = sbr.rel (%p192) target = $region40
      $region39: #{tpu_custom_call.1} parent=5 // pred_region
        %s196 = ssub.s32 %s14, 1
        %s197 = smul.u32 4, %s19
        %p198 = scmp.lt.s32.totalorder %s197, 7
        %s199 = scalar_select %p198, %s197, 7
        %s200 = smul.addr %s199, 4
        %s201 = scalar_lea.vmem %s0, %s200
        %p202 = pneg %p40
        %p203 = pneg %p37
        %p204 = pneg %p61
        %p205 = pneg %p58
        %p206 = pneg %p82
        %p207 = pneg %p79
        %p208 = pneg %p103
        %p209 = pneg %p100
        %p210 = pneg %p124
        %p211 = pneg %p121
        %p212 = pneg %p150
        %p213 = pneg %p147
        %s214 = sand.u32 %s137, 1
        %s215 = scalar_lea.sflag [#allocation3], %s214
        %s216 = sand.u32 %s137, 1
        %s217 = smul.addr %s216, 16
        %s218 = scalar_lea.vmem [#allocation2], %s217
        %s219 = smul.u32 4, %s19
        %p220 = scmp.lt.s32.totalorder %s219, 7
        %s221 = scalar_select %p220, %s219, 7
        %s222 = smul.addr %s221, 4
        %s223 = scalar_lea.vmem %s0, %s222
        %s224 = smul.u32 4, %s19
        %s225 = smul.u32 4, %s19
        %v227 = vld [vmem:[%s223] sm:$0xf]
        %v228 = vld [vmem:[%s223 + $0x4] sm:$0xf]
        %v229 = vld [vmem:[%s223 + $0x8] sm:$0xf]
        %v230 = vld [vmem:[%s223 + $0xc] sm:$0xf]
        %v231 = vld [vmem:[%s1] sm:$0xf]
        %v232 = vld [vmem:[%s1 + $0x4] sm:$0xf]
        %v233 = vld [vmem:[%s1 + $0x8] sm:$0xf]
        %v234 = vld [vmem:[%s1 + $0xc] sm:$0xf]
        %v235 = vld [vmem:[%s1 + $0x10] sm:$0xf]
        %v236 = vld [vmem:[%s1 + $0x14] sm:$0xf]
        %v237 = vld [vmem:[%s1 + $0x18] sm:$0xf]
        %v238 = vld [vmem:[%s1 + $0x1c] sm:$0xf]
        %v239 = vld [vmem:[%s1 + $0x20] sm:$0xf]
        %v240 = vld [vmem:[%s1 + $0x24] sm:$0xf]
        %v241 = vld [vmem:[%s1 + $0x28] sm:$0xf]
        %v242 = vld [vmem:[%s1 + $0x2c] sm:$0xf]
        %v243 = vld [vmem:[%s1 + $0x30] sm:$0xf]
        %v244 = vld [vmem:[%s1 + $0x34] sm:$0xf]
        %v245 = vld [vmem:[%s1 + $0x38] sm:$0xf]
        %v246 = vld [vmem:[%s1 + $0x3c] sm:$0xf]
        %v247 = vld [vmem:[%s2] sm:$0x1]
        %v249 = vlaneseq
        %v250 = vshrl.u32 %v249, 7
        %v251 = vsub.s32 0, %v250
        %v252 = vrot.slane %v247, %v251
        %v258 = vunpack.c.l.b16 %v227
        %v259 = vunpack.c.l.b16 %v228
        %v260 = vunpack.c.l.b16 %v229
        %v261 = vunpack.c.l.b16 %v230
        %v262 = vpack.c.b16 %v259, %v258
        %v263 = vpack.c.b16 %v261, %v260
        %v282 = vunpack.c.l.b16 %v231
        %v283 = vunpack.c.l.b16 %v232
        %v284 = vunpack.c.l.b16 %v233
        %v285 = vunpack.c.l.b16 %v234
        %v286 = vunpack.c.l.b16 %v235
        %v287 = vunpack.c.l.b16 %v236
        %v288 = vunpack.c.l.b16 %v237
        %v289 = vunpack.c.l.b16 %v238
        %v290 = vunpack.c.l.b16 %v239
        %v291 = vunpack.c.l.b16 %v240
        %v292 = vunpack.c.l.b16 %v241
        %v293 = vunpack.c.l.b16 %v242
        %v294 = vunpack.c.l.b16 %v243
        %v295 = vunpack.c.l.b16 %v244
        %v296 = vunpack.c.l.b16 %v245
        %v297 = vunpack.c.l.b16 %v246
        %v298 = vpack.c.b16 %v283, %v282
        %v299 = vpack.c.b16 %v285, %v284
        %v300 = vpack.c.b16 %v287, %v286
        %v301 = vpack.c.b16 %v289, %v288
        %v302 = vpack.c.b16 %v291, %v290
        %v303 = vpack.c.b16 %v293, %v292
        %v304 = vpack.c.b16 %v295, %v294
        %v305 = vpack.c.b16 %v297, %v296
        %314 = vmatprep.subr.bf16.mxu0 0
        %315 = vmatpush1.bf16.msra.mxu0 %v298
        %316 = vmatprep.subr.bf16.mxu0 0
        %317 = vmatpush1.bf16.msra.mxu0 %v299
        %318 = vmatprep.subr.bf16.mxu0 0
        %319 = vmatpush1.bf16.msra.mxu0 %v300
        %320 = vmatprep.subr.bf16.mxu0 0
        %321 = vmatpush1.bf16.msra.mxu0 %v301
        %322 = vmatprep.subr.bf16.mxu0 0
        %323 = vmatpush1.bf16.msra.mxu0 %v302
        %324 = vmatprep.subr.bf16.mxu0 0
        %325 = vmatpush1.bf16.msra.mxu0 %v303
        %326 = vmatprep.subr.bf16.mxu0 0
        %327 = vmatpush1.bf16.msra.mxu0 %v304
        %328 = vmatprep.subr.bf16.mxu0 0
        %329 = vmatpush1.bf16.msra.mxu0 %v305
        %330 = vmatprep.subr.bf16.mxu0 0
        %331 = vmatpush1.bf16.msra.mxu0 0
        %332 = vmatprep.subr.bf16.mxu0 0
        %333 = vmatpush1.bf16.msra.mxu0 0
        %334 = vmatprep.subr.bf16.mxu0 0
        %335 = vmatpush1.bf16.msra.mxu0 0
        %336 = vmatprep.subr.bf16.mxu0 0
        %337 = vmatpush1.bf16.msra.mxu0 0
        %338 = vmatprep.subr.bf16.mxu0 0
        %339 = vmatpush1.bf16.msra.mxu0 0
        %340 = vmatprep.subr.bf16.mxu0 0
        %341 = vmatpush1.bf16.msra.mxu0 0
        %342 = vmatprep.subr.bf16.mxu0 0
        %343 = vmatpush1.bf16.msra.mxu0 0
        %344 = vmatprep.subr.bf16.mxu0 0
        %345 = vmatpush1.bf16.msra.mxu0 0
        %346 = vmatprep.mubr.bf16.mxu0 0
        %347 = vmatmul.mubr.bf16.gmra.mrb[0].mxu0 %v262
        %v348 = vpop.f32.mrb[0].mxu0
        %v349 = vadd.f32 %v252, %v348
        %v350 = vpop.f32.mrb[0].mxu0
        %v351 = vpop.f32.mrb[0].mxu0
        %v352 = vadd.f32 %v252, %v351
        %v353 = vpop.f32.mrb[0].mxu0
        %354 = vmatprep.mubr.bf16.mxu0 0
        %355 = vmatmul.mubr.bf16.gmra.mrb[0].mxu0 %v263
        %v356 = vpop.f32.mrb[0].mxu0
        %v357 = vadd.f32 %v252, %v356
        %v358 = vpop.f32.mrb[0].mxu0
        %v359 = vpop.f32.mrb[0].mxu0
        %v360 = vadd.f32 %v252, %v359
        %v361 = vpop.f32.mrb[0].mxu0
        %362 = vdwg.mxu0
        %v363 = vmax.f32 %v349, 0.0
        %v364 = vmax.f32 %v352, 0.0
        %v365 = vmax.f32 %v357, 0.0
        %v366 = vmax.f32 %v360, 0.0
        %v367 = vpack.c.bf16 %v364, %v363
        %v368 = vpack.c.bf16 %v366, %v365
        %v369 = vld [vmem:[%s3] sm:$0xf]
        %v370 = vld [vmem:[%s3 + $0x4] sm:$0xf]
        %v371 = vld [vmem:[%s3 + $0x8] sm:$0xf]
        %v372 = vld [vmem:[%s3 + $0xc] sm:$0xf]
        %v373 = vld [vmem:[%s4] sm:$0x1]
        %v375 = vlaneseq
        %v376 = vshrl.u32 %v375, 7
        %v377 = vsub.s32 0, %v376
        %v378 = vrot.slane %v373, %v377
        %v384 = vunpack.c.l.b16 %v369
        %v385 = vunpack.c.l.b16 %v370
        %v386 = vunpack.c.l.b16 %v371
        %v387 = vunpack.c.l.b16 %v372
        %v388 = vpack.c.b16 %v385, %v384
        %v389 = vpack.c.b16 %v387, %v386
        %vm392 = vcmask 261120
        %v394 = vsel %vm392, %v367, 0
        %v397 = vsel %vm392, %v368, 0
        %399 = vmatprep.subr.bf16.mxu0 0
        %400 = vmatpush1.bf16.msra.mxu0 %v388
        %401 = vmatprep.subr.bf16.mxu0 0
        %402 = vmatpush1.bf16.msra.mxu0 %v389
        %403 = vmatprep.subr.bf16.mxu0 0
        %404 = vmatpush1.bf16.msra.mxu0 0
        %405 = vmatprep.subr.bf16.mxu0 0
        %406 = vmatpush1.bf16.msra.mxu0 0
        %407 = vmatprep.subr.bf16.mxu0 0
        %408 = vmatpush1.bf16.msra.mxu0 0
        %409 = vmatprep.subr.bf16.mxu0 0
        %410 = vmatpush1.bf16.msra.mxu0 0
        %411 = vmatprep.subr.bf16.mxu0 0
        %412 = vmatpush1.bf16.msra.mxu0 0
        %413 = vmatprep.subr.bf16.mxu0 0
        %414 = vmatpush1.bf16.msra.mxu0 0
        %415 = vmatprep.subr.bf16.mxu0 0
        %416 = vmatpush1.bf16.msra.mxu0 0
        %417 = vmatprep.subr.bf16.mxu0 0
        %418 = vmatpush1.bf16.msra.mxu0 0
        %419 = vmatprep.subr.bf16.mxu0 0
        %420 = vmatpush1.bf16.msra.mxu0 0
        %421 = vmatprep.subr.bf16.mxu0 0
        %422 = vmatpush1.bf16.msra.mxu0 0
        %423 = vmatprep.subr.bf16.mxu0 0
        %424 = vmatpush1.bf16.msra.mxu0 0
        %425 = vmatprep.subr.bf16.mxu0 0
        %426 = vmatpush1.bf16.msra.mxu0 0
        %427 = vmatprep.subr.bf16.mxu0 0
        %428 = vmatpush1.bf16.msra.mxu0 0
        %429 = vmatprep.subr.bf16.mxu0 0
        %430 = vmatpush1.bf16.msra.mxu0 0
        %431 = vmatprep.mubr.bf16.mxu0 0
        %432 = vmatmul.mubr.bf16.gmra.mrb[0].mxu0 %v394
        %v433 = vpop.f32.mrb[0].mxu0
        %v434 = vadd.f32 %v378, %v433
        %v435 = vpop.f32.mrb[0].mxu0
        %v436 = vpop.f32.mrb[0].mxu0
        %v437 = vadd.f32 %v378, %v436
        %v438 = vpop.f32.mrb[0].mxu0
        %439 = vmatprep.mubr.bf16.mxu0 0
        %440 = vmatmul.mubr.bf16.gmra.mrb[0].mxu0 %v397
        %v441 = vpop.f32.mrb[0].mxu0
        %v442 = vadd.f32 %v378, %v441
        %v443 = vpop.f32.mrb[0].mxu0
        %v444 = vpop.f32.mrb[0].mxu0
        %v445 = vadd.f32 %v378, %v444
        %v446 = vpop.f32.mrb[0].mxu0
        %447 = vdwg.mxu0
        %v448 = vpack.c.bf16 %v437, %v434
        %v449 = vpack.c.bf16 %v445, %v442
        %v452 = vunpack.c.l.b16 %v448
        %v453 = vunpack.c.h.b16 %v448
        %v454 = vunpack.c.l.b16 %v449
        %v455 = vunpack.c.h.b16 %v449
        %v456 = vpack.c.b16 %v452, %v452
        %v457 = vpack.c.b16 %v453, %v453
        %v458 = vpack.c.b16 %v454, %v454
        %v459 = vpack.c.b16 %v455, %v455
        %464 = vst [vmem:[%s218] sm:$0xf] %v456
        %465 = vst [vmem:[%s218 + $0x4] sm:$0xf] %v457
        %466 = vst [vmem:[%s218 + $0x8] sm:$0xf] %v458
        %467 = vst [vmem:[%s218 + $0xc] sm:$0xf] %v459
        %s468 = sand.u32 %s137, 1
        %s469 = scalar_lea.sflag [#allocation3], %s468
        %s470 = sand.u32 %s137, 1
        %s471 = smul.addr %s470, 16
        %s472 = scalar_lea.vmem [#allocation2], %s471
        // Predicated region
        $region41: #{tpu_custom_call.1} parent=39 // pred_check
          %p473 = pneg %p147
        $region42: #{tpu_custom_call.1} parent=39 // pred_check_branch
          %475 = sbr.rel (%p473) target = $region44
        $region43: #{tpu_custom_call.1} parent=39 // pred_region
          %s476 = smul.u32 4, %s19
          %s478 = ssub.s32 256, 256
          %479 = vsyncadd %s469, %s478
          %s480 = smul.addr %s476, 64
          %s481 = scalar_lea.hbm %s5, %s480
          %s482 = sshll.u32 %s472, 4
          %s483 = int_to_ptr.vmem [resolvable:$true] %s482
          %488 = dma.vmem_to_hbm [thread:$0]  %s483, 256, %s481, %s469, 64, 64, 4
        $region44: #{tpu_custom_call.1} parent=39 // pred_fallthru
          _
      $region40: #{tpu_custom_call.1} parent=5 // pred_fallthru
        _
      %p489 = scmp.le.s32.totalorder 2, %s14
      // Predicated region
      $region45: #{tpu_custom_call.1} parent=5 // pred_check
        %p490 = pneg %p489
      $region46: #{tpu_custom_call.1} parent=5 // pred_check_branch
        %492 = sbr.rel (%p490) target = $region48
      $region47: #{tpu_custom_call.1} parent=5 // pred_region
        %s493 = ssub.s32 %s14, 2
        // Predicated region
        $region49: #{tpu_custom_call.1} parent=47 // pred_check
          %p494 = pneg %p153
        $region50: #{tpu_custom_call.1} parent=47 // pred_check_branch
          %496 = sbr.rel (%p494) target = $region52
        $region51: #{tpu_custom_call.1} parent=47 // pred_region
          %s497 = sand.u32 %s138, 1
          %s498 = scalar_lea.sflag [#allocation3], %s497
          %s499 = sand.u32 %s138, 1
          %s500 = smul.addr %s499, 16
          %s501 = scalar_lea.vmem [#allocation2], %s500
          %502 = dma.done %s498, 256
        $region52: #{tpu_custom_call.1} parent=47 // pred_fallthru
          _
      $region48: #{tpu_custom_call.1} parent=5 // pred_fallthru
        _
    $region6: #{tpu_custom_call.1} parent=1 // loop_footer
      %s18 = sadd.s32 1, %s14
    $region7: #{tpu_custom_call.1} parent=1 // loop_footer_branch
      %13 = sbr.rel target = $region3
    $region8: #{tpu_custom_call.1} parent=1 // loop_exit
      _
    %503 = vsyncpa [#allocation3], 1
    %s504 = scalar_lea.sflag [#allocation3], 1
    %505 = vsyncpa %s504, 1

// kernel: tpu_custom_call.1
$region0: #{tpu_custom_call.1}
  #allocation0 [shape = 'u32[]', space=smem, size = 0x4, offset = 0x4, fixed_abs, tag = 'smem constant byte address 0x4 - core index']
  #allocation1 [shape = 'u32[144,128]{1,0:T(1,128)}', space=vmem, size = 0x12000, scoped, tag = 'internal scratch']
  %s0 = inlined_call_operand.vmem [shape: bf16[64,128], index: 0, kind: input, shape index: {}]
  %s1 = inlined_call_operand.vmem [shape: bf16[128,32], index: 1, kind: input, shape index: {}]
  %s2 = inlined_call_operand.vmem [shape: f32[1,32], index: 2, kind: input, shape index: {}]
  %s3 = inlined_call_operand.vmem [shape: bf16[32,128], index: 3, kind: input, shape index: {}]
  %s4 = inlined_call_operand.vmem [shape: f32[1,128], index: 4, kind: input, shape index: {}]
  %s5 = inlined_call_operand.hbm [shape: bf16[64,128], index: 5, kind: output, shape index: {}]
  %s6 = sld [smem:[#allocation0]]
  $region53: #{tpu_custom_call.1} parent=0
    _
  %s8 = ssub.s32 1, %s6
  %s9 = scalar_select 0, %s8, %s6
  $region1: #{tpu_custom_call.1} parent=0
    #allocation2 [shape = 'u8[16384]{0}', space=vmem, size = 0x4000, scoped, tag = 'output window, operand 0']
    #allocation3 [shape = 's32[2]{0}', space=sflag, size = 0x8, scoped, tag = 'scoped memory for tpu_custom_call.1']
    %10 = vsyncpa [#allocation3], 0
    %s11 = scalar_lea.sflag [#allocation3], 1
    %12 = vsyncpa %s11, 0
    loop: start=0, step=1, limit=4
    $region2: #{tpu_custom_call.1} parent=1 // loop_pre_header
      _
    $region3: #{tpu_custom_call.1} parent=1 // loop_header
      %s14 = sphi 0, %s18
      %p15 = scmp.ge.s32.totalorder %s14, 4
      %s24 = sphi 0, %s26
      %s27 = sphi 0, %s24
      %s28 = sphi 0, %s27
      %s44 = sphi 0, %s28
      %s48 = sphi 0, %s48
      %s50 = sphi 0, %s48
      %s51 = sphi 0, %s50
      %s65 = sphi 0, %s51
      %s69 = sphi 0, %s69
      %s71 = sphi 0, %s69
      %s72 = sphi 0, %s71
      %s86 = sphi 0, %s72
      %s90 = sphi 0, %s90
      %s92 = sphi 0, %s90
      %s93 = sphi 0, %s92
      %s107 = sphi 0, %s93
      %s111 = sphi 0, %s111
      %s113 = sphi 0, %s111
      %s114 = sphi 0, %s113
      %s128 = sphi 0, %s114
      %s134 = sphi 0, %s136
      %s137 = sphi 0, %s134
      %s138 = sphi 0, %s137
      %s154 = sphi 0, %s138
    $region4: #{tpu_custom_call.1} parent=1 // loop_header_branch
      %17 = sbr.rel (%p15) target = $region8
    $region5: #{tpu_custom_call.1} parent=1 // loop_body
      %s19 = ssub.s32 %s14, 1
      %s20 = ssub.s32 %s14, 2
      %s21 = sadd.s32 %s14, 1
      %s22 = ssub.s32 %s14, %s21
      %p23 = scmp.eq.s32.totalorder %s22, 0
      %s25 = sadd.s32 %s24, 1
      %s26 = scalar_select %p23, %s24, %s25
      %p29 = pneg %p23
      %p30 = scmp.eq.s32.totalorder %s14, 1
      %p31 = por %p29, %p30
      %p32 = scmp.ne.s32.totalorder %s24, %s27
      %p33 = scmp.eq.s32.totalorder %s14, 0
      %p34 = por %p32, %p33
      %p35 = scmp.ne.s32.totalorder %s24, %s27
      %p36 = scmp.eq.s32.totalorder %s19, 1
      %p37 = por %p35, %p36
      %p38 = scmp.ne.s32.totalorder %s27, %s28
      %p39 = scmp.eq.s32.totalorder %s19, 0
      %p40 = por %p38, %p39
      %p41 = scmp.ne.s32.totalorder %s27, %s28
      %p42 = scmp.eq.s32.totalorder %s20, 1
      %p43 = por %p41, %p42
      %p45 = scmp.ne.s32.totalorder %s28, %s44
      %p46 = scmp.eq.s32.totalorder %s20, 0
      %p47 = por %p45, %p46
      %s49 = sadd.s32 %s48, 1
      %p52 = scmp.eq.s32.totalorder %s14, 1
      %p53 = scmp.ne.s32.totalorder %s48, %s50
      %p54 = scmp.eq.s32.totalorder %s14, 0
      %p55 = por %p53, %p54
      %p56 = scmp.ne.s32.totalorder %s48, %s50
      %p57 = scmp.eq.s32.totalorder %s19, 1
      %p58 = por %p56, %p57
      %p59 = scmp.ne.s32.totalorder %s50, %s51
      %p60 = scmp.eq.s32.totalorder %s19, 0
      %p61 = por %p59, %p60
      %p62 = scmp.ne.s32.totalorder %s50, %s51
      %p63 = scmp.eq.s32.totalorder %s20, 1
      %p64 = por %p62, %p63
      %p66 = scmp.ne.s32.totalorder %s51, %s65
      %p67 = scmp.eq.s32.totalorder %s20, 0
      %p68 = por %p66, %p67
      %s70 = sadd.s32 %s69, 1
      %p73 = scmp.eq.s32.totalorder %s14, 1
      %p74 = scmp.ne.s32.totalorder %s69, %s71
      %p75 = scmp.eq.s32.totalorder %s14, 0
      %p76 = por %p74, %p75
      %p77 = scmp.ne.s32.totalorder %s69, %s71
      %p78 = scmp.eq.s32.totalorder %s19, 1
      %p79 = por %p77, %p78
      %p80 = scmp.ne.s32.totalorder %s71, %s72
      %p81 = scmp.eq.s32.totalorder %s19, 0
      %p82 = por %p80, %p81
      %p83 = scmp.ne.s32.totalorder %s71, %s72
      %p84 = scmp.eq.s32.totalorder %s20, 1
      %p85 = por %p83, %p84
      %p87 = scmp.ne.s32.totalorder %s72, %s86
      %p88 = scmp.eq.s32.totalorder %s20, 0
      %p89 = por %p87, %p88
      %s91 = sadd.s32 %s90, 1
      %p94 = scmp.eq.s32.totalorder %s14, 1
      %p95 = scmp.ne.s32.totalorder %s90, %s92
      %p96 = scmp.eq.s32.totalorder %s14, 0
      %p97 = por %p95, %p96
      %p98 = scmp.ne.s32.totalorder %s90, %s92
      %p99 = scmp.eq.s32.totalorder %s19, 1
      %p100 = por %p98, %p99
      %p101 = scmp.ne.s32.totalorder %s92, %s93
      %p102 = scmp.eq.s32.totalorder %s19, 0
      %p103 = por %p101, %p102
      %p104 = scmp.ne.s32.totalorder %s92, %s93
      %p105 = scmp.eq.s32.totalorder %s20, 1
      %p106 = por %p104, %p105
      %p108 = scmp.ne.s32.totalorder %s93, %s107
      %p109 = scmp.eq.s32.totalorder %s20, 0
      %p110 = por %p108, %p109
      %s112 = sadd.s32 %s111, 1
      %p115 = scmp.eq.s32.totalorder %s14, 1
      %p116 = scmp.ne.s32.totalorder %s111, %s113
      %p117 = scmp.eq.s32.totalorder %s14, 0
      %p118 = por %p116, %p117
      %p119 = scmp.ne.s32.totalorder %s111, %s113
      %p120 = scmp.eq.s32.totalorder %s19, 1
      %p121 = por %p119, %p120
      %p122 = scmp.ne.s32.totalorder %s113, %s114
      %p123 = scmp.eq.s32.totalorder %s19, 0
      %p124 = por %p122, %p123
      %p125 = scmp.ne.s32.totalorder %s113, %s114
      %p126 = scmp.eq.s32.totalorder %s20, 1
      %p127 = por %p125, %p126
      %p129 = scmp.ne.s32.totalorder %s114, %s128
      %p130 = scmp.eq.s32.totalorder %s20, 0
      %p131 = por %p129, %p130
      %s132 = ssub.s32 %s14, %s21
      %p133 = scmp.eq.s32.totalorder %s132, 0
      %s135 = sadd.s32 %s134, 1
      %s136 = scalar_select %p133, %s134, %s135
      %p139 = pneg %p133
      %p140 = scmp.eq.s32.totalorder %s14, 1
      %p141 = por %p139, %p140
      %p142 = scmp.ne.s32.totalorder %s134, %s137
      %p143 = scmp.eq.s32.totalorder %s14, 0
      %p144 = por %p142, %p143
      %p145 = scmp.ne.s32.totalorder %s134, %s137
      %p146 = scmp.eq.s32.totalorder %s19, 1
      %p147 = por %p145, %p146
      %p148 = scmp.ne.s32.totalorder %s137, %s138
      %p149 = scmp.eq.s32.totalorder %s19, 0
      %p150 = por %p148, %p149
      %p151 = scmp.ne.s32.totalorder %s137, %s138
      %p152 = scmp.eq.s32.totalorder %s20, 1
      %p153 = por %p151, %p152
      %p155 = scmp.ne.s32.totalorder %s138, %s154
      %p156 = scmp.eq.s32.totalorder %s20, 0
      %p157 = por %p155, %p156
      %p158 = scmp.le.s32.totalorder 1, %s14
      %p159 = scmp.lt.s32.totalorder %s14, 3
      %p160 = pnand %p158, %p159
      %p161 = pneg %p160
      // Predicated region
      $region9: #{tpu_custom_call.1} parent=5 // pred_check
        _
      $region10: #{tpu_custom_call.1} parent=5 // pred_check_branch
        %163 = sbr.rel (%p160) target = $region12
      $region11: #{tpu_custom_call.1} parent=5 // pred_region
        %s164 = ssub.s32 %s14, 1
        // Predicated region
        $region13: #{tpu_custom_call.1} parent=11 // pred_check
          %p165 = pneg %p61
        $region14: #{tpu_custom_call.1} parent=11 // pred_check_branch
          %167 = sbr.rel (%p165) target = $region16
        $region15: #{tpu_custom_call.1} parent=11 // pred_region
          _
        $region16: #{tpu_custom_call.1} parent=11 // pred_fallthru
          _
        // Predicated region
        $region17: #{tpu_custom_call.1} parent=11 // pred_check
          %p168 = pneg %p82
        $region18: #{tpu_custom_call.1} parent=11 // pred_check_branch
          %170 = sbr.rel (%p168) target = $region20
        $region19: #{tpu_custom_call.1} parent=11 // pred_region
          _
        $region20: #{tpu_custom_call.1} parent=11 // pred_fallthru
          _
        // Predicated region
        $region21: #{tpu_custom_call.1} parent=11 // pred_check
          %p171 = pneg %p103
        $region22: #{tpu_custom_call.1} parent=11 // pred_check_branch
          %173 = sbr.rel (%p171) target = $region24
        $region23: #{tpu_custom_call.1} parent=11 // pred_region
          _
        $region24: #{tpu_custom_call.1} parent=11 // pred_fallthru
          _
        // Predicated region
        $region25: #{tpu_custom_call.1} parent=11 // pred_check
          %p174 = pneg %p124
        $region26: #{tpu_custom_call.1} parent=11 // pred_check_branch
          %176 = sbr.rel (%p174) target = $region28
        $region27: #{tpu_custom_call.1} parent=11 // pred_region
          _
        $region28: #{tpu_custom_call.1} parent=11 // pred_fallthru
          _
      $region12: #{tpu_custom_call.1} parent=5 // pred_fallthru
        _
      %p177 = scmp.lt.s32.totalorder %s14, 2
      // Predicated region
      $region29: #{tpu_custom_call.1} parent=5 // pred_check
        %p178 = pneg %p177
      $region30: #{tpu_custom_call.1} parent=5 // pred_check_branch
        %180 = sbr.rel (%p178) target = $region32
      $region31: #{tpu_custom_call.1} parent=5 // pred_region
        // Predicated region
        $region33: #{tpu_custom_call.1} parent=31 // pred_check
          %p181 = pneg %p34
        $region34: #{tpu_custom_call.1} parent=31 // pred_check_branch
          %183 = sbr.rel (%p181) target = $region36
        $region35: #{tpu_custom_call.1} parent=31 // pred_region
          %s184 = smul.u32 4, %s14
          %p185 = scmp.lt.s32.totalorder %s184, 7
          %s186 = scalar_select %p185, %s184, 7
          %s187 = smul.addr %s186, 4
          %s188 = scalar_lea.vmem %s0, %s187
          %s189 = smul.u32 4, %s14
        $region36: #{tpu_custom_call.1} parent=31 // pred_fallthru
          _
      $region32: #{tpu_custom_call.1} parent=5 // pred_fallthru
        _
      %p190 = scmp.le.s32.totalorder 1, %s14
      %p191 = scmp.lt.s32.totalorder %s14, 3
      %p192 = pnand %p190, %p191
      %p193 = pneg %p192
      // Predicated region
      $region37: #{tpu_custom_call.1} parent=5 // pred_check
        _
      $region38: #{tpu_custom_call.1} parent=5 // pred_check_branch
        %195 = sbr.rel (%p192) target = $region40
      $region39: #{tpu_custom_call.1} parent=5 // pred_region
        %s196 = ssub.s32 %s14, 1
        %s197 = smul.u32 4, %s19
        %p198 = scmp.lt.s32.totalorder %s197, 7
        %s199 = scalar_select %p198, %s197, 7
        %s200 = smul.addr %s199, 4
        %s201 = scalar_lea.vmem %s0, %s200
        %p202 = pneg %p40
        %p203 = pneg %p37
        %p204 = pneg %p61
        %p205 = pneg %p58
        %p206 = pneg %p82
        %p207 = pneg %p79
        %p208 = pneg %p103
        %p209 = pneg %p100
        %p210 = pneg %p124
        %p211 = pneg %p121
        %p212 = pneg %p150
        %p213 = pneg %p147
        %s214 = sand.u32 %s137, 1
        %s215 = scalar_lea.sflag [#allocation3], %s214
        %s216 = sand.u32 %s137, 1
        %s217 = smul.addr %s216, 16
        %s218 = scalar_lea.vmem [#allocation2], %s217
        %s219 = smul.u32 4, %s19
        %p220 = scmp.lt.s32.totalorder %s219, 7
        %s221 = scalar_select %p220, %s219, 7
        %s222 = smul.addr %s221, 4
        %s223 = scalar_lea.vmem %s0, %s222
        %s224 = smul.u32 4, %s19
        %s225 = smul.u32 4, %s19
        %v227 = vld [vmem:[%s223] sm:$0xf]
        %v228 = vld [vmem:[%s223 + $0x4] sm:$0xf]
        %v229 = vld [vmem:[%s223 + $0x8] sm:$0xf]
        %v230 = vld [vmem:[%s223 + $0xc] sm:$0xf]
        %v231 = vld [vmem:[%s1] sm:$0xf]
        %v232 = vld [vmem:[%s1 + $0x4] sm:$0xf]
        %v233 = vld [vmem:[%s1 + $0x8] sm:$0xf]
        %v234 = vld [vmem:[%s1 + $0xc] sm:$0xf]
        %v235 = vld [vmem:[%s1 + $0x10] sm:$0xf]
        %v236 = vld [vmem:[%s1 + $0x14] sm:$0xf]
        %v237 = vld [vmem:[%s1 + $0x18] sm:$0xf]
        %v238 = vld [vmem:[%s1 + $0x1c] sm:$0xf]
        %v239 = vld [vmem:[%s1 + $0x20] sm:$0xf]
        %v240 = vld [vmem:[%s1 + $0x24] sm:$0xf]
        %v241 = vld [vmem:[%s1 + $0x28] sm:$0xf]
        %v242 = vld [vmem:[%s1 + $0x2c] sm:$0xf]
        %v243 = vld [vmem:[%s1 + $0x30] sm:$0xf]
        %v244 = vld [vmem:[%s1 + $0x34] sm:$0xf]
        %v245 = vld [vmem:[%s1 + $0x38] sm:$0xf]
        %v246 = vld [vmem:[%s1 + $0x3c] sm:$0xf]
        %v247 = vld [vmem:[%s2] sm:$0x1]
        %v249 = vlaneseq
        %v250 = vshrl.u32 %v249, 7
        %v251 = vsub.s32 0, %v250
        %v252 = vrot.slane %v247, %v251
        %v258 = vunpack.c.l.b16 %v227
        %v259 = vunpack.c.l.b16 %v228
        %v260 = vunpack.c.l.b16 %v229
        %v261 = vunpack.c.l.b16 %v230
        %v262 = vpack.c.b16 %v259, %v258
        %v263 = vpack.c.b16 %v261, %v260
        %v282 = vunpack.c.l.b16 %v231
        %v283 = vunpack.c.l.b16 %v232
        %v284 = vunpack.c.l.b16 %v233
        %v285 = vunpack.c.l.b16 %v234
        %v286 = vunpack.c.l.b16 %v235
        %v287 = vunpack.c.l.b16 %v236
        %v288 = vunpack.c.l.b16 %v237
        %v289 = vunpack.c.l.b16 %v238
        %v290 = vunpack.c.l.b16 %v239
        %v291 = vunpack.c.l.b16 %v240
        %v292 = vunpack.c.l.b16 %v241
        %v293 = vunpack.c.l.b16 %v242
        %v294 = vunpack.c.l.b16 %v243
        %v295 = vunpack.c.l.b16 %v244
        %v296 = vunpack.c.l.b16 %v245
        %v297 = vunpack.c.l.b16 %v246
        %v298 = vpack.c.b16 %v283, %v282
        %v299 = vpack.c.b16 %v285, %v284
        %v300 = vpack.c.b16 %v287, %v286
        %v301 = vpack.c.b16 %v289, %v288
        %v302 = vpack.c.b16 %v291, %v290
        %v303 = vpack.c.b16 %v293, %v292
        %v304 = vpack.c.b16 %v295, %v294
        %v305 = vpack.c.b16 %v297, %v296
        %314 = vmatprep.subr.bf16.mxu0 0
        %315 = vmatpush1.bf16.msra.mxu0 %v298
        %316 = vmatprep.subr.bf16.mxu0 0
        %317 = vmatpush1.bf16.msra.mxu0 %v299
        %318 = vmatprep.subr.bf16.mxu0 0
        %319 = vmatpush1.bf16.msra.mxu0 %v300
        %320 = vmatprep.subr.bf16.mxu0 0
        %321 = vmatpush1.bf16.msra.mxu0 %v301
        %322 = vmatprep.subr.bf16.mxu0 0
        %323 = vmatpush1.bf16.msra.mxu0 %v302
        %324 = vmatprep.subr.bf16.mxu0 0
        %325 = vmatpush1.bf16.msra.mxu0 %v303
        %326 = vmatprep.subr.bf16.mxu0 0
        %327 = vmatpush1.bf16.msra.mxu0 %v304
        %328 = vmatprep.subr.bf16.mxu0 0
        %329 = vmatpush1.bf16.msra.mxu0 %v305
        %330 = vmatprep.subr.bf16.mxu0 0
        %331 = vmatpush1.bf16.msra.mxu0 0
        %332 = vmatprep.subr.bf16.mxu0 0
        %333 = vmatpush1.bf16.msra.mxu0 0
        %334 = vmatprep.subr.bf16.mxu0 0
        %335 = vmatpush1.bf16.msra.mxu0 0
        %336 = vmatprep.subr.bf16.mxu0 0
        %337 = vmatpush1.bf16.msra.mxu0 0
        %338 = vmatprep.subr.bf16.mxu0 0
        %339 = vmatpush1.bf16.msra.mxu0 0
        %340 = vmatprep.subr.bf16.mxu0 0
        %341 = vmatpush1.bf16.msra.mxu0 0
        %342 = vmatprep.subr.bf16.mxu0 0
        %343 = vmatpush1.bf16.msra.mxu0 0
        %344 = vmatprep.subr.bf16.mxu0 0
        %345 = vmatpush1.bf16.msra.mxu0 0
        %346 = vmatprep.mubr.bf16.mxu0 0
        %347 = vmatmul.mubr.bf16.gmra.mrb[0].mxu0 %v262
        %v348 = vpop.f32.mrb[0].mxu0
        %v349 = vadd.f32 %v252, %v348
        %v350 = vpop.f32.mrb[0].mxu0
        %v351 = vpop.f32.mrb[0].mxu0
        %v352 = vadd.f32 %v252, %v351
        %v353 = vpop.f32.mrb[0].mxu0
        %354 = vmatprep.mubr.bf16.mxu0 0
        %355 = vmatmul.mubr.bf16.gmra.mrb[0].mxu0 %v263
        %v356 = vpop.f32.mrb[0].mxu0
        %v357 = vadd.f32 %v252, %v356
        %v358 = vpop.f32.mrb[0].mxu0
        %v359 = vpop.f32.mrb[0].mxu0
        %v360 = vadd.f32 %v252, %v359
        %v361 = vpop.f32.mrb[0].mxu0
        %362 = vdwg.mxu0
        %v363 = vmax.f32 %v349, 0.0
        %v364 = vmax.f32 %v352, 0.0
        %v365 = vmax.f32 %v357, 0.0
        %v366 = vmax.f32 %v360, 0.0
        %v367 = vpack.c.bf16 %v364, %v363
        %v368 = vpack.c.bf16 %v366, %v365
        %v369 = vld [vmem:[%s3] sm:$0xf]
        %v370 = vld [vmem:[%s3 + $0x4] sm:$0xf]
        %v371 = vld [vmem:[%s3 + $0x8] sm:$0xf]
        %v372 = vld [vmem:[%s3 + $0xc] sm:$0xf]
        %v373 = vld [vmem:[%s4] sm:$0x1]
        %v375 = vlaneseq
        %v376 = vshrl.u32 %v375, 7
        %v377 = vsub.s32 0, %v376
        %v378 = vrot.slane %v373, %v377
        %v384 = vunpack.c.l.b16 %v369
        %v385 = vunpack.c.l.b16 %v370
        %v386 = vunpack.c.l.b16 %v371
        %v387 = vunpack.c.l.b16 %v372
        %v388 = vpack.c.b16 %v385, %v384
        %v389 = vpack.c.b16 %v387, %v386
        %vm392 = vcmask 261120
        %v394 = vsel %vm392, %v367, 0
        %v397 = vsel %vm392, %v368, 0
        %399 = vmatprep.subr.bf16.mxu0 0
        %400 = vmatpush1.bf16.msra.mxu0 %v388
        %401 = vmatprep.subr.bf16.mxu0 0
        %402 = vmatpush1.bf16.msra.mxu0 %v389
        %403 = vmatprep.subr.bf16.mxu0 0
        %404 = vmatpush1.bf16.msra.mxu0 0
        %405 = vmatprep.subr.bf16.mxu0 0
        %406 = vmatpush1.bf16.msra.mxu0 0
        %407 = vmatprep.subr.bf16.mxu0 0
        %408 = vmatpush1.bf16.msra.mxu0 0
        %409 = vmatprep.subr.bf16.mxu0 0
        %410 = vmatpush1.bf16.msra.mxu0 0
        %411 = vmatprep.subr.bf16.mxu0 0
        %412 = vmatpush1.bf16.msra.mxu0 0
        %413 = vmatprep.subr.bf16.mxu0 0
        %414 = vmatpush1.bf16.msra.mxu0 0
        %415 = vmatprep.subr.bf16.mxu0 0
        %416 = vmatpush1.bf16.msra.mxu0 0
        %417 = vmatprep.subr.bf16.mxu0 0
        %418 = vmatpush1.bf16.msra.mxu0 0
        %419 = vmatprep.subr.bf16.mxu0 0
        %420 = vmatpush1.bf16.msra.mxu0 0
        %421 = vmatprep.subr.bf16.mxu0 0
        %422 = vmatpush1.bf16.msra.mxu0 0
        %423 = vmatprep.subr.bf16.mxu0 0
        %424 = vmatpush1.bf16.msra.mxu0 0
        %425 = vmatprep.subr.bf16.mxu0 0
        %426 = vmatpush1.bf16.msra.mxu0 0
        %427 = vmatprep.subr.bf16.mxu0 0
        %428 = vmatpush1.bf16.msra.mxu0 0
        %429 = vmatprep.subr.bf16.mxu0 0
        %430 = vmatpush1.bf16.msra.mxu0 0
        %431 = vmatprep.mubr.bf16.mxu0 0
        %432 = vmatmul.mubr.bf16.gmra.mrb[0].mxu0 %v394
        %v433 = vpop.f32.mrb[0].mxu0
        %v434 = vadd.f32 %v378, %v433
        %v435 = vpop.f32.mrb[0].mxu0
        %v436 = vpop.f32.mrb[0].mxu0
        %v437 = vadd.f32 %v378, %v436
        %v438 = vpop.f32.mrb[0].mxu0
        %439 = vmatprep.mubr.bf16.mxu0 0
        %440 = vmatmul.mubr.bf16.gmra.mrb[0].mxu0 %v397
        %v441 = vpop.f32.mrb[0].mxu0
        %v442 = vadd.f32 %v378, %v441
        %v443 = vpop.f32.mrb[0].mxu0
        %v444 = vpop.f32.mrb[0].mxu0
        %v445 = vadd.f32 %v378, %v444
        %v446 = vpop.f32.mrb[0].mxu0
        %447 = vdwg.mxu0
        %v448 = vpack.c.bf16 %v437, %v434
        %v449 = vpack.c.bf16 %v445, %v442
        %v452 = vunpack.c.l.b16 %v448
        %v453 = vunpack.c.h.b16 %v448
        %v454 = vunpack.c.l.b16 %v449
        %v455 = vunpack.c.h.b16 %v449
        %v456 = vpack.c.b16 %v452, %v452
        %v457 = vpack.c.b16 %v453, %v453
        %v458 = vpack.c.b16 %v454, %v454
        %v459 = vpack.c.b16 %v455, %v455
        %464 = vst [vmem:[%s218] sm:$0xf] %v456
        %465 = vst [vmem:[%s218 + $0x4] sm:$0xf] %v457
        %466 = vst [vmem:[%s218 + $0x8] sm:$0xf] %v458
        %467 = vst [vmem:[%s218 + $0xc] sm:$0xf] %v459
        %s468 = sand.u32 %s137, 1
        %s469 = scalar_lea.sflag [#allocation3], %s468
        %s470 = sand.u32 %s137, 1
        %s471 = smul.addr %s470, 16
        %s472 = scalar_lea.vmem [#allocation2], %s471
        // Predicated region
        $region41: #{tpu_custom_call.1} parent=39 // pred_check
          %p473 = pneg %p147
        $region42: #{tpu_custom_call.1} parent=39 // pred_check_branch
          %475 = sbr.rel (%p473) target = $region44
        $region43: #{tpu_custom_call.1} parent=39 // pred_region
          %s476 = smul.u32 4, %s19
          %s478 = ssub.s32 256, 256
          %479 = vsyncadd %s469, %s478
          %s480 = smul.addr %s476, 64
          %s481 = scalar_lea.hbm %s5, %s480
          %s482 = sshll.u32 %s472, 4
          %s483 = int_to_ptr.vmem [resolvable:$true] %s482
          %488 = dma.vmem_to_hbm [thread:$0]  %s483, 256, %s481, %s469, 64, 64, 4
        $region44: #{tpu_custom_call.1} parent=39 // pred_fallthru
          _
      $region40: #{tpu_custom_call.1} parent=5 // pred_fallthru
        _
      %p489 = scmp.le.s32.totalorder 2, %s14
      // Predicated region
      $region45: #{tpu_custom_call.1} parent=5 // pred_check
        %p490 = pneg %p489
      $region46: #{tpu_custom_call.1} parent=5 // pred_check_branch
        %492 = sbr.rel (%p490) target = $region48
      $region47: #{tpu_custom_call.1} parent=5 // pred_region
        %s493 = ssub.s32 %s14, 2
        // Predicated region
        $region49: #{tpu_custom_call.1} parent=47 // pred_check
          %p494 = pneg %p153
        $region50: #{tpu_custom_call.1} parent=47 // pred_check_branch
          %496 = sbr.rel (%p494) target = $region52
        $region51: #{tpu_custom_call.1} parent=47 // pred_region
          %s497 = sand.u32 %s138, 1
          %s498 = scalar_lea.sflag [#allocation3], %s497
          %s499 = sand.u32 %s138, 1
          %s500 = smul.addr %s499, 16
          %s501 = scalar_lea.vmem [#allocation2], %s500
          %502 = dma.done %s498, 256
        $region52: #{tpu_custom_call.1} parent=47 // pred_fallthru
          _
      $region48: #{tpu_custom_call.1} parent=5 // pred_fallthru
        _
    $region6: #{tpu_custom_call.1} parent=1 // loop_footer
      %s18 = sadd.s32 1, %s14
    $region7: #{tpu_custom_call.1} parent=1 // loop_footer_branch
      %13 = sbr.rel target = $region3
    $region8: #{tpu_custom_call.1} parent=1 // loop_exit
      _
    %503 = vsyncpa [#allocation3], 1
    %s504 = scalar_lea.sflag [#allocation3], 1
    %505 = vsyncpa %s504, 1

</llo_original>
